<compile_context>
chip_gen: v6e
topology: v6e:2x2x1
jax: 0.10.0
libtpu: 0.0.40
codegen_flags: <defaults>
</compile_context>

<pallas_src>
import jax
import jax.numpy as jnp
from jax.experimental import pallas as pl
from jax.experimental.pallas import tpu as pltpu


_ENT_LANES = 128                       # lane-dense entropy output width
_VMEM_LIMIT_BYTES = 64 * 1024 * 1024   # explicit scoped-VMEM budget (fits v7x)


def _round_up(x, m):
    return ((x + m - 1) // m) * m


def _choose_tile_t(T, max_tile=256):
    """Token-axis tile: big (256) for real T, >=2 grid steps when possible."""
    t8 = _round_up(T, 8)
    tile = min(max_tile, t8)
    # Keep at least 2 parallel grid steps so the token axis can shard across
    # the two TensorCores on v7x (dimension_semantics=("parallel",)).
    if tile == t8 and t8 >= 16:
        tile = _round_up(t8 // 2, 8)
    return tile


# ----------------------------------------------------------------------------
# Fused LM core: one-hot embedding gather (MXU) -> MLP (GELU) -> LM head
# All matmuls take bf16 operands and accumulate in f32.
# ----------------------------------------------------------------------------
def _lm_head_core(ids_ref, embed_ref, w1_ref, b1_ref, wlm_ref, blm_ref):
    tile_t = ids_ref.shape[0]
    V = embed_ref.shape[0]

    ids = ids_ref[...]                                            # [tT, 1] i32
    col = jax.lax.broadcasted_iota(jnp.int32, (tile_t, V), 1)     # [tT, V]
    onehot = (col == ids).astype(jnp.bfloat16)                    # [tT, V] bf16

    # Embedding lookup as a one-hot matmul on the MXU (exact lookup).
    x = jnp.dot(onehot, embed_ref[...],
                preferred_element_type=jnp.float32)               # [tT, D] f32

    h = jnp.dot(x.astype(jnp.bfloat16), w1_ref[...],
                preferred_element_type=jnp.float32) + b1_ref[...]  # [tT, H] f32
    h = jax.nn.gelu(h)                                            # f32 (v5e-safe)

    z = jnp.dot(h.astype(jnp.bfloat16), wlm_ref[...],
                preferred_element_type=jnp.float32) + blm_ref[...]  # [tT, V] f32
    return z


def _logits_kernel(ids_ref, embed_ref, w1_ref, b1_ref, wlm_ref, blm_ref, o_ref):
    o_ref[...] = _lm_head_core(ids_ref, embed_ref, w1_ref, b1_ref,
                               wlm_ref, blm_ref)


def _logprob_entropy_kernel(ids_ref, embed_ref, w1_ref, b1_ref, wlm_ref,
                            blm_ref, lp_ref, ent_ref):
    z = _lm_head_core(ids_ref, embed_ref, w1_ref, b1_ref, wlm_ref, blm_ref)
    m = jnp.max(z, axis=-1, keepdims=True)
    e = jnp.exp(z - m)
    s = jnp.sum(e, axis=-1, keepdims=True)
    lp = z - (m + jnp.log(s))                                     # log_softmax
    lp_ref[...] = lp
    p = e * pl.reciprocal(s, approx=True)                         # EUP recip
    ent = -jnp.sum(p * lp, axis=-1, keepdims=True)                # [tT, 1]
    ent_ref[...] = jnp.broadcast_to(ent, ent_ref.shape)           # lane-dense


def _common_in_specs(tile_t, V, D, H):
    return [
        pl.BlockSpec((tile_t, 1), lambda i: (i, 0)),   # token ids (padded)
        pl.BlockSpec((V, D), lambda i: (0, 0)),        # embedding table (bf16)
        pl.BlockSpec((D, H), lambda i: (0, 0)),        # W1 (bf16)
        pl.BlockSpec((1, H), lambda i: (0, 0)),        # b1 (f32)
        pl.BlockSpec((H, V), lambda i: (0, 0)),        # W_lm (bf16)
        pl.BlockSpec((1, V), lambda i: (0, 0)),        # b_lm (f32)
    ]


def lm_logits(ids_pad, embed, w1, b1, wlm, blm, *, tile_t):
    T_pad = ids_pad.shape[0]
    V, D = embed.shape
    H = w1.shape[1]
    grid = (T_pad // tile_t,)
    return pl.pallas_call(
        _logits_kernel,
        out_shape=jax.ShapeDtypeStruct((T_pad, V), jnp.float32),
        grid_spec=pltpu.PrefetchScalarGridSpec(
            num_scalar_prefetch=0,
            grid=grid,
            in_specs=_common_in_specs(tile_t, V, D, H),
            out_specs=pl.BlockSpec((tile_t, V), lambda i: (i, 0)),
        ),
        compiler_params=pltpu.CompilerParams(
            dimension_semantics=("parallel",),
            vmem_limit_bytes=_VMEM_LIMIT_BYTES),
    )(ids_pad, embed, w1, b1, wlm, blm)


def lm_logprob_entropy(ids_pad, embed, w1, b1, wlm, blm, *, tile_t):
    T_pad = ids_pad.shape[0]
    V, D = embed.shape
    H = w1.shape[1]
    grid = (T_pad // tile_t,)
    return pl.pallas_call(
        _logprob_entropy_kernel,
        out_shape=(
            jax.ShapeDtypeStruct((T_pad, V), jnp.float32),
            jax.ShapeDtypeStruct((T_pad, _ENT_LANES), jnp.float32),
        ),
        grid_spec=pltpu.PrefetchScalarGridSpec(
            num_scalar_prefetch=0,
            grid=grid,
            in_specs=_common_in_specs(tile_t, V, D, H),
            out_specs=(
                pl.BlockSpec((tile_t, V), lambda i: (i, 0)),
                pl.BlockSpec((tile_t, _ENT_LANES), lambda i: (i, 0)),
            ),
        ),
        compiler_params=pltpu.CompilerParams(
            dimension_semantics=("parallel",),
            vmem_limit_bytes=_VMEM_LIMIT_BYTES),
    )(ids_pad, embed, w1, b1, wlm, blm)


# ----------------------------------------------------------------------------
# TRPOPolicy equivalent (parameters created deterministically in-script)
# ----------------------------------------------------------------------------
class TRPOPolicyPallas:
    def __init__(self, vocab_size, d_model=32, hidden=64, seed=0):
        self.vocab_size = vocab_size
        k = jax.random.PRNGKey(seed)
        ke, k1, k2 = jax.random.split(k, 3)
        # bf16 matmul operands (MXU-native); biases / accumulation in f32.
        self.embed = (jax.random.normal(ke, (vocab_size, d_model), jnp.float32)
                      * 0.02).astype(jnp.bfloat16)
        self.w1 = (jax.random.normal(k1, (d_model, hidden), jnp.float32)
                   * 0.05).astype(jnp.bfloat16)
        self.b1 = jnp.zeros((1, hidden), jnp.float32)
        self.wlm = (jax.random.normal(k2, (hidden, vocab_size), jnp.float32)
                    * 0.05).astype(jnp.bfloat16)
        self.blm = jnp.zeros((1, vocab_size), jnp.float32)

    def _prep_ids(self, input_ids):
        B, S = input_ids.shape
        T = B * S
        tile_t = _choose_tile_t(T)
        T_pad = tile_t * pl.cdiv(T, tile_t)
        ids = input_ids.reshape(T).astype(jnp.int32)
        ids = jnp.pad(ids, (0, T_pad - T))       # pad with token 0; tail sliced off
        return ids.reshape(T_pad, 1), T, tile_t

    def forward(self, input_ids, attention_mask=None):
        # TODO(synk): attention_mask is accepted but unused (per-token synthetic LM).
        B, S = input_ids.shape
        ids_pad, T, tile_t = self._prep_ids(input_ids)
        z = lm_logits(ids_pad, self.embed, self.w1, self.b1, self.wlm, self.blm,
                      tile_t=tile_t)
        return z[:T].reshape(B, S, self.vocab_size)          # [B, S, V] f32

    def get_action(self, input_ids, attention_mask=None, *, key=None):
        B, S = input_ids.shape
        ids_pad, T, tile_t = self._prep_ids(input_ids)
        lp, ent = lm_logprob_entropy(ids_pad, self.embed, self.w1, self.b1,
                                     self.wlm, self.blm, tile_t=tile_t)
        lp = lp[:T]                                          # [T, V]
        ent = ent[:T, 0]                                     # [T]
        # glue: categorical sampling (Categorical.sample equivalent)
        if key is None:
            key = jax.random.PRNGKey(0)
        action = jax.random.categorical(key, lp)             # [T]
        log_prob = jnp.take_along_axis(lp, action[:, None], axis=-1)[:, 0]
        return (action.reshape(B, S),
                log_prob.reshape(B, S),
                ent.reshape(B, S))


def _reference_logits(policy, input_ids):
    """Pure-JAX reference with the identical bf16/f32 dtype path."""
    B, S = input_ids.shape
    x = jnp.take(policy.embed, input_ids.reshape(-1), axis=0)       # [T, D] bf16
    h = jnp.dot(x, policy.w1, preferred_element_type=jnp.float32) + policy.b1
    h = jax.nn.gelu(h)
    z = jnp.dot(h.astype(jnp.bfloat16), policy.wlm,
                preferred_element_type=jnp.float32) + policy.blm
    return z.reshape(B, S, policy.vocab_size)


if __name__ == "__main__":
    VOCAB = 128
    B, S = 2, 8

    policy = TRPOPolicyPallas(vocab_size=VOCAB, d_model=32, hidden=64, seed=0)

    key = jax.random.PRNGKey(0)
    k_ids, k_sample = jax.random.split(key)
    input_ids = jax.random.randint(k_ids, (B, S), 0, VOCAB, dtype=jnp.int32)
    attention_mask = jnp.ones((B, S), jnp.int32)

    logits = policy.forward(input_ids, attention_mask)
    action, log_prob, entropy = policy.get_action(
        input_ids, attention_mask, key=k_sample)

    jax.block_until_ready((logits, action, log_prob, entropy))

    # shape / dtype checks
    assert logits.shape == (B, S, VOCAB) and logits.dtype == jnp.float32
    assert action.shape == (B, S)
    assert log_prob.shape == (B, S)
    assert entropy.shape == (B, S)
    assert bool(jnp.all(jnp.isfinite(logits)))

    # numerical check against a pure-JAX reference with the same dtype path
    ref = _reference_logits(policy, input_ids)
    assert bool(jnp.allclose(logits, ref, atol=5e-3, rtol=5e-3))

    print("KERNEL_OK")
</pallas_src>

<mosaic_0001>
module attributes {stable_mosaic.version = 11 : i64} {
  func.func @_logits_kernel(%arg0: i32, %arg1: memref<8x1xi32, #tpu.memory_space<vmem>>, %arg2: memref<128x32xbf16, #tpu.memory_space<vmem>>, %arg3: memref<32x64xbf16, #tpu.memory_space<vmem>>, %arg4: memref<1x64xf32, #tpu.memory_space<vmem>>, %arg5: memref<64x128xbf16, #tpu.memory_space<vmem>>, %arg6: memref<1x128xf32, #tpu.memory_space<vmem>>, %arg7: memref<8x128xf32, #tpu.memory_space<vmem>>) attributes {dimension_semantics = [#tpu.dimension_semantics<parallel>], iteration_bounds = array<i64: 2>, scalar_prefetch = 0 : i64, scratch_operands = 0 : i64, tpu.core_type = #tpu.core_type<tc>, window_params = [{transform_indices = @transform_0, window_bounds = array<i64: 8, 1>}, {pipeline_mode = #tpu.pipeline_mode<synchronous>, transform_indices = @transform_1, window_bounds = array<i64: 128, 32>}, {pipeline_mode = #tpu.pipeline_mode<synchronous>, transform_indices = @transform_2, window_bounds = array<i64: 32, 64>}, {pipeline_mode = #tpu.pipeline_mode<synchronous>, transform_indices = @transform_3, window_bounds = array<i64: 1, 64>}, {pipeline_mode = #tpu.pipeline_mode<synchronous>, transform_indices = @transform_4, window_bounds = array<i64: 64, 128>}, {pipeline_mode = #tpu.pipeline_mode<synchronous>, transform_indices = @transform_5, window_bounds = array<i64: 1, 128>}, {transform_indices = @transform_6, window_bounds = array<i64: 8, 128>}]} {
    %c0 = arith.constant 0 : index
    %c0_0 = arith.constant 0 : index
    %0 = vector.load %arg1[%c0, %c0_0] : memref<8x1xi32, #tpu.memory_space<vmem>>, vector<8x1xi32>
    %1 = tpu.iota {dimensions = array<i32: 1>} : vector<8x128xi32>
    %2 = vector.broadcast %0 : vector<8x1xi32> to vector<8x128xi32>
    %3 = arith.cmpi eq, %1, %2 : vector<8x128xi32>
    %4 = arith.extui %3 : vector<8x128xi1> to vector<8x128xi32>
    %5 = arith.sitofp %4 : vector<8x128xi32> to vector<8x128xf32>
    %6 = arith.truncf %5 : vector<8x128xf32> to vector<8x128xbf16>
    %c0_1 = arith.constant 0 : index
    %c0_2 = arith.constant 0 : index
    %7 = vector.load %arg2[%c0_1, %c0_2] : memref<128x32xbf16, #tpu.memory_space<vmem>>, vector<128x32xbf16>
    %cst = arith.constant dense<0.000000e+00> : vector<8x32xf32>
    %8 = tpu.matmul %6, %7, %cst {dimension_numbers = #tpu.dot_dimension_numbers<[1], [0], [0], [1], [0, 0, 1, 1], [], []>} : vector<8x128xbf16>, vector<128x32xbf16>, vector<8x32xf32> -> vector<8x32xf32>
    %9 = arith.truncf %8 : vector<8x32xf32> to vector<8x32xbf16>
    %c0_3 = arith.constant 0 : index
    %c0_4 = arith.constant 0 : index
    %10 = vector.load %arg3[%c0_3, %c0_4] : memref<32x64xbf16, #tpu.memory_space<vmem>>, vector<32x64xbf16>
    %cst_5 = arith.constant dense<0.000000e+00> : vector<8x64xf32>
    %11 = tpu.matmul %9, %10, %cst_5 {dimension_numbers = #tpu.dot_dimension_numbers<[1], [0], [0], [1], [0, 0, 1, 1], [], []>} : vector<8x32xbf16>, vector<32x64xbf16>, vector<8x64xf32> -> vector<8x64xf32>
    %c0_6 = arith.constant 0 : index
    %c0_7 = arith.constant 0 : index
    %12 = vector.load %arg4[%c0_6, %c0_7] : memref<1x64xf32, #tpu.memory_space<vmem>>, vector<1x64xf32>
    %13 = vector.broadcast %12 : vector<1x64xf32> to vector<8x64xf32>
    %14 = arith.addf %11, %13 : vector<8x64xf32>
    %15 = arith.mulf %14, %14 : vector<8x64xf32>
    %16 = arith.mulf %14, %15 : vector<8x64xf32>
    %cst_8 = arith.constant 4.471500e-02 : f32
    %17 = vector.broadcast %cst_8 : f32 to vector<8x64xf32>
    %18 = arith.mulf %17, %16 : vector<8x64xf32>
    %19 = arith.addf %14, %18 : vector<8x64xf32>
    %cst_9 = arith.constant 0.797884583 : f32
    %20 = vector.broadcast %cst_9 : f32 to vector<8x64xf32>
    %21 = arith.mulf %20, %19 : vector<8x64xf32>
    %22 = math.tanh %21 : vector<8x64xf32>
    %cst_10 = arith.constant 1.000000e+00 : f32
    %23 = vector.broadcast %cst_10 : f32 to vector<8x64xf32>
    %24 = arith.addf %23, %22 : vector<8x64xf32>
    %cst_11 = arith.constant 5.000000e-01 : f32
    %25 = vector.broadcast %cst_11 : f32 to vector<8x64xf32>
    %26 = arith.mulf %25, %24 : vector<8x64xf32>
    %27 = arith.mulf %14, %26 : vector<8x64xf32>
    %28 = arith.truncf %27 : vector<8x64xf32> to vector<8x64xbf16>
    %c0_12 = arith.constant 0 : index
    %c0_13 = arith.constant 0 : index
    %29 = vector.load %arg5[%c0_12, %c0_13] : memref<64x128xbf16, #tpu.memory_space<vmem>>, vector<64x128xbf16>
    %cst_14 = arith.constant dense<0.000000e+00> : vector<8x128xf32>
    %30 = tpu.matmul %28, %29, %cst_14 {dimension_numbers = #tpu.dot_dimension_numbers<[1], [0], [0], [1], [0, 0, 1, 1], [], []>} : vector<8x64xbf16>, vector<64x128xbf16>, vector<8x128xf32> -> vector<8x128xf32>
    %c0_15 = arith.constant 0 : index
    %c0_16 = arith.constant 0 : index
    %31 = vector.load %arg6[%c0_15, %c0_16] : memref<1x128xf32, #tpu.memory_space<vmem>>, vector<1x128xf32>
    %32 = vector.broadcast %31 : vector<1x128xf32> to vector<8x128xf32>
    %33 = arith.addf %30, %32 : vector<8x128xf32>
    %c0_17 = arith.constant 0 : index
    %c0_18 = arith.constant 0 : index
    %34 = vector.load %arg7[%c0_17, %c0_18] : memref<8x128xf32, #tpu.memory_space<vmem>>, vector<8x128xf32>
    tpu.vector_store %arg7[%c0_17, %c0_18], %33 {strides = array<i32>} : memref<8x128xf32, #tpu.memory_space<vmem>>, vector<8x128xf32>,
    return
  }
  func.func @transform_0(%arg0: i32) -> (i32, i32) {
    %c0_i32 = arith.constant 0 : i32
    %c0_i32_0 = arith.constant 0 : i32
    return %arg0, %c0_i32 : i32, i32
  }
  func.func @transform_1(%arg0: i32) -> (i32, i32) {
    %c0_i32 = arith.constant 0 : i32
    %c0_i32_0 = arith.constant 0 : i32
    %c0_i32_1 = arith.constant 0 : i32
    return %c0_i32, %c0_i32_0 : i32, i32
  }
  func.func @transform_2(%arg0: i32) -> (i32, i32) {
    %c0_i32 = arith.constant 0 : i32
    %c0_i32_0 = arith.constant 0 : i32
    %c0_i32_1 = arith.constant 0 : i32
    return %c0_i32, %c0_i32_0 : i32, i32
  }
  func.func @transform_3(%arg0: i32) -> (i32, i32) {
    %c0_i32 = arith.constant 0 : i32
    %c0_i32_0 = arith.constant 0 : i32
    %c0_i32_1 = arith.constant 0 : i32
    return %c0_i32, %c0_i32_0 : i32, i32
  }
  func.func @transform_4(%arg0: i32) -> (i32, i32) {
    %c0_i32 = arith.constant 0 : i32
    %c0_i32_0 = arith.constant 0 : i32
    %c0_i32_1 = arith.constant 0 : i32
    return %c0_i32, %c0_i32_0 : i32, i32
  }
  func.func @transform_5(%arg0: i32) -> (i32, i32) {
    %c0_i32 = arith.constant 0 : i32
    %c0_i32_0 = arith.constant 0 : i32
    %c0_i32_1 = arith.constant 0 : i32
    return %c0_i32, %c0_i32_0 : i32, i32
  }
  func.func @transform_6(%arg0: i32) -> (i32, i32) {
    %c0_i32 = arith.constant 0 : i32
    %c0_i32_0 = arith.constant 0 : i32
    return %arg0, %c0_i32 : i32, i32
  }
}

</mosaic_0001>

<llo_original>
// kernel: tpu_custom_call.1
$region0: #{tpu_custom_call.1}
  #allocation0 [shape = 'u32[]', space=smem, size = 0x4, offset = 0x4, fixed_abs, tag = 'smem constant byte address 0x4 - core index']
  #allocation1 [shape = 'u32[144,128]{1,0:T(1,128)}', space=vmem, size = 0x12000, scoped, tag = 'internal scratch']
  %s0 = inlined_call_operand.vmem [shape: s32[16,1], index: 0, kind: input, shape index: {}]
  %s1 = inlined_call_operand.vmem [shape: bf16[128,32], index: 1, kind: input, shape index: {}]
  %s2 = inlined_call_operand.vmem [shape: bf16[32,64], index: 2, kind: input, shape index: {}]
  %s3 = inlined_call_operand.vmem [shape: f32[1,64], index: 3, kind: input, shape index: {}]
  %s4 = inlined_call_operand.vmem [shape: bf16[64,128], index: 4, kind: input, shape index: {}]
  %s5 = inlined_call_operand.vmem [shape: f32[1,128], index: 5, kind: input, shape index: {}]
  %s6 = inlined_call_operand.hbm [shape: f32[16,128], index: 6, kind: output, shape index: {}]
  %s7 = sld [smem:[#allocation0]]
  $region57: #{tpu_custom_call.1} parent=0
    _
  %s9 = ssub.s32 1, %s7
  %s10 = scalar_select 0, %s9, %s7
  $region1: #{tpu_custom_call.1} parent=0
    #allocation2 [shape = 'u8[8192]{0}', space=vmem, size = 0x2000, scoped, tag = 'output window, operand 0']
    #allocation3 [shape = 's32[2]{0}', space=sflag, size = 0x8, scoped, tag = 'scoped memory for tpu_custom_call.1']
    %11 = vsyncpa [#allocation3], 0
    %s12 = scalar_lea.sflag [#allocation3], 1
    %13 = vsyncpa %s12, 0
    loop: start=0, step=1, limit=4
    $region2: #{tpu_custom_call.1} parent=1 // loop_pre_header
      _
    $region3: #{tpu_custom_call.1} parent=1 // loop_header
      %s15 = sphi 0, %s19
      %p16 = scmp.ge.s32.totalorder %s15, 4
      %s25 = sphi 0, %s27
      %s28 = sphi 0, %s25
      %s29 = sphi 0, %s28
      %s45 = sphi 0, %s29
      %s49 = sphi 0, %s49
      %s51 = sphi 0, %s49
      %s52 = sphi 0, %s51
      %s66 = sphi 0, %s52
      %s70 = sphi 0, %s70
      %s72 = sphi 0, %s70
      %s73 = sphi 0, %s72
      %s87 = sphi 0, %s73
      %s91 = sphi 0, %s91
      %s93 = sphi 0, %s91
      %s94 = sphi 0, %s93
      %s108 = sphi 0, %s94
      %s112 = sphi 0, %s112
      %s114 = sphi 0, %s112
      %s115 = sphi 0, %s114
      %s129 = sphi 0, %s115
      %s133 = sphi 0, %s133
      %s135 = sphi 0, %s133
      %s136 = sphi 0, %s135
      %s150 = sphi 0, %s136
      %s156 = sphi 0, %s158
      %s159 = sphi 0, %s156
      %s160 = sphi 0, %s159
      %s176 = sphi 0, %s160
    $region4: #{tpu_custom_call.1} parent=1 // loop_header_branch
      %18 = sbr.rel (%p16) target = $region8
    $region5: #{tpu_custom_call.1} parent=1 // loop_body
      %s20 = ssub.s32 %s15, 1
      %s21 = ssub.s32 %s15, 2
      %s22 = sadd.s32 %s15, 1
      %s23 = ssub.s32 %s15, %s22
      %p24 = scmp.eq.s32.totalorder %s23, 0
      %s26 = sadd.s32 %s25, 1
      %s27 = scalar_select %p24, %s25, %s26
      %p30 = pneg %p24
      %p31 = scmp.eq.s32.totalorder %s15, 1
      %p32 = por %p30, %p31
      %p33 = scmp.ne.s32.totalorder %s25, %s28
      %p34 = scmp.eq.s32.totalorder %s15, 0
      %p35 = por %p33, %p34
      %p36 = scmp.ne.s32.totalorder %s25, %s28
      %p37 = scmp.eq.s32.totalorder %s20, 1
      %p38 = por %p36, %p37
      %p39 = scmp.ne.s32.totalorder %s28, %s29
      %p40 = scmp.eq.s32.totalorder %s20, 0
      %p41 = por %p39, %p40
      %p42 = scmp.ne.s32.totalorder %s28, %s29
      %p43 = scmp.eq.s32.totalorder %s21, 1
      %p44 = por %p42, %p43
      %p46 = scmp.ne.s32.totalorder %s29, %s45
      %p47 = scmp.eq.s32.totalorder %s21, 0
      %p48 = por %p46, %p47
      %s50 = sadd.s32 %s49, 1
      %p53 = scmp.eq.s32.totalorder %s15, 1
      %p54 = scmp.ne.s32.totalorder %s49, %s51
      %p55 = scmp.eq.s32.totalorder %s15, 0
      %p56 = por %p54, %p55
      %p57 = scmp.ne.s32.totalorder %s49, %s51
      %p58 = scmp.eq.s32.totalorder %s20, 1
      %p59 = por %p57, %p58
      %p60 = scmp.ne.s32.totalorder %s51, %s52
      %p61 = scmp.eq.s32.totalorder %s20, 0
      %p62 = por %p60, %p61
      %p63 = scmp.ne.s32.totalorder %s51, %s52
      %p64 = scmp.eq.s32.totalorder %s21, 1
      %p65 = por %p63, %p64
      %p67 = scmp.ne.s32.totalorder %s52, %s66
      %p68 = scmp.eq.s32.totalorder %s21, 0
      %p69 = por %p67, %p68
      %s71 = sadd.s32 %s70, 1
      %p74 = scmp.eq.s32.totalorder %s15, 1
      %p75 = scmp.ne.s32.totalorder %s70, %s72
      %p76 = scmp.eq.s32.totalorder %s15, 0
      %p77 = por %p75, %p76
      %p78 = scmp.ne.s32.totalorder %s70, %s72
      %p79 = scmp.eq.s32.totalorder %s20, 1
      %p80 = por %p78, %p79
      %p81 = scmp.ne.s32.totalorder %s72, %s73
      %p82 = scmp.eq.s32.totalorder %s20, 0
      %p83 = por %p81, %p82
      %p84 = scmp.ne.s32.totalorder %s72, %s73
      %p85 = scmp.eq.s32.totalorder %s21, 1
      %p86 = por %p84, %p85
      %p88 = scmp.ne.s32.totalorder %s73, %s87
      %p89 = scmp.eq.s32.totalorder %s21, 0
      %p90 = por %p88, %p89
      %s92 = sadd.s32 %s91, 1
      %p95 = scmp.eq.s32.totalorder %s15, 1
      %p96 = scmp.ne.s32.totalorder %s91, %s93
      %p97 = scmp.eq.s32.totalorder %s15, 0
      %p98 = por %p96, %p97
      %p99 = scmp.ne.s32.totalorder %s91, %s93
      %p100 = scmp.eq.s32.totalorder %s20, 1
      %p101 = por %p99, %p100
      %p102 = scmp.ne.s32.totalorder %s93, %s94
      %p103 = scmp.eq.s32.totalorder %s20, 0
      %p104 = por %p102, %p103
      %p105 = scmp.ne.s32.totalorder %s93, %s94
      %p106 = scmp.eq.s32.totalorder %s21, 1
      %p107 = por %p105, %p106
      %p109 = scmp.ne.s32.totalorder %s94, %s108
      %p110 = scmp.eq.s32.totalorder %s21, 0
      %p111 = por %p109, %p110
      %s113 = sadd.s32 %s112, 1
      %p116 = scmp.eq.s32.totalorder %s15, 1
      %p117 = scmp.ne.s32.totalorder %s112, %s114
      %p118 = scmp.eq.s32.totalorder %s15, 0
      %p119 = por %p117, %p118
      %p120 = scmp.ne.s32.totalorder %s112, %s114
      %p121 = scmp.eq.s32.totalorder %s20, 1
      %p122 = por %p120, %p121
      %p123 = scmp.ne.s32.totalorder %s114, %s115
      %p124 = scmp.eq.s32.totalorder %s20, 0
      %p125 = por %p123, %p124
      %p126 = scmp.ne.s32.totalorder %s114, %s115
      %p127 = scmp.eq.s32.totalorder %s21, 1
      %p128 = por %p126, %p127
      %p130 = scmp.ne.s32.totalorder %s115, %s129
      %p131 = scmp.eq.s32.totalorder %s21, 0
      %p132 = por %p130, %p131
      %s134 = sadd.s32 %s133, 1
      %p137 = scmp.eq.s32.totalorder %s15, 1
      %p138 = scmp.ne.s32.totalorder %s133, %s135
      %p139 = scmp.eq.s32.totalorder %s15, 0
      %p140 = por %p138, %p139
      %p141 = scmp.ne.s32.totalorder %s133, %s135
      %p142 = scmp.eq.s32.totalorder %s20, 1
      %p143 = por %p141, %p142
      %p144 = scmp.ne.s32.totalorder %s135, %s136
      %p145 = scmp.eq.s32.totalorder %s20, 0
      %p146 = por %p144, %p145
      %p147 = scmp.ne.s32.totalorder %s135, %s136
      %p148 = scmp.eq.s32.totalorder %s21, 1
      %p149 = por %p147, %p148
      %p151 = scmp.ne.s32.totalorder %s136, %s150
      %p152 = scmp.eq.s32.totalorder %s21, 0
      %p153 = por %p151, %p152
      %s154 = ssub.s32 %s15, %s22
      %p155 = scmp.eq.s32.totalorder %s154, 0
      %s157 = sadd.s32 %s156, 1
      %s158 = scalar_select %p155, %s156, %s157
      %p161 = pneg %p155
      %p162 = scmp.eq.s32.totalorder %s15, 1
      %p163 = por %p161, %p162
      %p164 = scmp.ne.s32.totalorder %s156, %s159
      %p165 = scmp.eq.s32.totalorder %s15, 0
      %p166 = por %p164, %p165
      %p167 = scmp.ne.s32.totalorder %s156, %s159
      %p168 = scmp.eq.s32.totalorder %s20, 1
      %p169 = por %p167, %p168
      %p170 = scmp.ne.s32.totalorder %s159, %s160
      %p171 = scmp.eq.s32.totalorder %s20, 0
      %p172 = por %p170, %p171
      %p173 = scmp.ne.s32.totalorder %s159, %s160
      %p174 = scmp.eq.s32.totalorder %s21, 1
      %p175 = por %p173, %p174
      %p177 = scmp.ne.s32.totalorder %s160, %s176
      %p178 = scmp.eq.s32.totalorder %s21, 0
      %p179 = por %p177, %p178
      %p180 = scmp.le.s32.totalorder 1, %s15
      %p181 = scmp.lt.s32.totalorder %s15, 3
      %p182 = pnand %p180, %p181
      %p183 = pneg %p182
      // Predicated region
      $region9: #{tpu_custom_call.1} parent=5 // pred_check
        _
      $region10: #{tpu_custom_call.1} parent=5 // pred_check_branch
        %185 = sbr.rel (%p182) target = $region12
      $region11: #{tpu_custom_call.1} parent=5 // pred_region
        %s186 = ssub.s32 %s15, 1
        // Predicated region
        $region13: #{tpu_custom_call.1} parent=11 // pred_check
          %p187 = pneg %p62
        $region14: #{tpu_custom_call.1} parent=11 // pred_check_branch
          %189 = sbr.rel (%p187) target = $region16
        $region15: #{tpu_custom_call.1} parent=11 // pred_region
          _
        $region16: #{tpu_custom_call.1} parent=11 // pred_fallthru
          _
        // Predicated region
        $region17: #{tpu_custom_call.1} parent=11 // pred_check
          %p190 = pneg %p83
        $region18: #{tpu_custom_call.1} parent=11 // pred_check_branch
          %192 = sbr.rel (%p190) target = $region20
        $region19: #{tpu_custom_call.1} parent=11 // pred_region
          _
        $region20: #{tpu_custom_call.1} parent=11 // pred_fallthru
          _
        // Predicated region
        $region21: #{tpu_custom_call.1} parent=11 // pred_check
          %p193 = pneg %p104
        $region22: #{tpu_custom_call.1} parent=11 // pred_check_branch
          %195 = sbr.rel (%p193) target = $region24
        $region23: #{tpu_custom_call.1} parent=11 // pred_region
          _
        $region24: #{tpu_custom_call.1} parent=11 // pred_fallthru
          _
        // Predicated region
        $region25: #{tpu_custom_call.1} parent=11 // pred_check
          %p196 = pneg %p125
        $region26: #{tpu_custom_call.1} parent=11 // pred_check_branch
          %198 = sbr.rel (%p196) target = $region28
        $region27: #{tpu_custom_call.1} parent=11 // pred_region
          _
        $region28: #{tpu_custom_call.1} parent=11 // pred_fallthru
          _
        // Predicated region
        $region29: #{tpu_custom_call.1} parent=11 // pred_check
          %p199 = pneg %p146
        $region30: #{tpu_custom_call.1} parent=11 // pred_check_branch
          %201 = sbr.rel (%p199) target = $region32
        $region31: #{tpu_custom_call.1} parent=11 // pred_region
          _
        $region32: #{tpu_custom_call.1} parent=11 // pred_fallthru
          _
      $region12: #{tpu_custom_call.1} parent=5 // pred_fallthru
        _
      %p202 = scmp.lt.s32.totalorder %s15, 2
      // Predicated region
      $region33: #{tpu_custom_call.1} parent=5 // pred_check
        %p203 = pneg %p202
      $region34: #{tpu_custom_call.1} parent=5 // pred_check_branch
        %205 = sbr.rel (%p203) target = $region36
      $region35: #{tpu_custom_call.1} parent=5 // pred_region
        // Predicated region
        $region37: #{tpu_custom_call.1} parent=35 // pred_check
          %p206 = pneg %p35
        $region38: #{tpu_custom_call.1} parent=35 // pred_check_branch
          %208 = sbr.rel (%p206) target = $region40
        $region39: #{tpu_custom_call.1} parent=35 // pred_region
          %p209 = scmp.lt.s32.totalorder %s15, 1
          %s210 = scalar_select %p209, %s15, 1
          %s211 = smul.addr %s210, 8
          %s212 = scalar_lea.vmem %s0, %s211
        $region40: #{tpu_custom_call.1} parent=35 // pred_fallthru
          _
      $region36: #{tpu_custom_call.1} parent=5 // pred_fallthru
        _
      %p213 = scmp.le.s32.totalorder 1, %s15
      %p214 = scmp.lt.s32.totalorder %s15, 3
      %p215 = pnand %p213, %p214
      %p216 = pneg %p215
      // Predicated region
      $region41: #{tpu_custom_call.1} parent=5 // pred_check
        _
      $region42: #{tpu_custom_call.1} parent=5 // pred_check_branch
        %218 = sbr.rel (%p215) target = $region44
      $region43: #{tpu_custom_call.1} parent=5 // pred_region
        %s219 = ssub.s32 %s15, 1
        %p220 = scmp.lt.s32.totalorder %s20, 1
        %s221 = scalar_select %p220, %s20, 1
        %s222 = smul.addr %s221, 8
        %s223 = scalar_lea.vmem %s0, %s222
        %p224 = pneg %p41
        %p225 = pneg %p38
        %p226 = pneg %p62
        %p227 = pneg %p59
        %p228 = pneg %p83
        %p229 = pneg %p80
        %p230 = pneg %p104
        %p231 = pneg %p101
        %p232 = pneg %p125
        %p233 = pneg %p122
        %p234 = pneg %p146
        %p235 = pneg %p143
        %p236 = pneg %p172
        %p237 = pneg %p169
        %s238 = sand.u32 %s159, 1
        %s239 = scalar_lea.sflag [#allocation3], %s238
        %s240 = sand.u32 %s159, 1
        %s241 = smul.addr %s240, 8
        %s242 = scalar_lea.vmem [#allocation2], %s241
        %p243 = scmp.lt.s32.totalorder %s20, 1
        %s244 = scalar_select %p243, %s20, 1
        %s245 = smul.addr %s244, 8
        %s246 = scalar_lea.vmem %s0, %s245
        %v248 = vld [vmem:[%s246] sm:$0xff]
        %v249 = vlaneseq
        %v250 = vand.u32 %v249, 127
        %251 = vset.pattern.permute.xlu0 0
        %252 = vperm.xlu0 %251, %v248
        %v253 = vpop.permute.xlu0 %252
        %vm254 = vcmp.eq.s32.totalorder %v250, %v253
        %v255 = vsel %vm254, 1, 0
        %v256 = vcvt.s32.f32 %v255
        %v257 = vpack.c.bf16 %v256, %v256
        %v258 = vld [vmem:[%s1] sm:$0xf]
        %v259 = vld [vmem:[%s1 + $0x4] sm:$0xf]
        %v260 = vld [vmem:[%s1 + $0x8] sm:$0xf]
        %v261 = vld [vmem:[%s1 + $0xc] sm:$0xf]
        %v262 = vld [vmem:[%s1 + $0x10] sm:$0xf]
        %v263 = vld [vmem:[%s1 + $0x14] sm:$0xf]
        %v264 = vld [vmem:[%s1 + $0x18] sm:$0xf]
        %v265 = vld [vmem:[%s1 + $0x1c] sm:$0xf]
        %v266 = vld [vmem:[%s1 + $0x20] sm:$0xf]
        %v267 = vld [vmem:[%s1 + $0x24] sm:$0xf]
        %v268 = vld [vmem:[%s1 + $0x28] sm:$0xf]
        %v269 = vld [vmem:[%s1 + $0x2c] sm:$0xf]
        %v270 = vld [vmem:[%s1 + $0x30] sm:$0xf]
        %v271 = vld [vmem:[%s1 + $0x34] sm:$0xf]
        %v272 = vld [vmem:[%s1 + $0x38] sm:$0xf]
        %v273 = vld [vmem:[%s1 + $0x3c] sm:$0xf]
        %v290 = vunpack.c.l.b16 %v258
        %v291 = vunpack.c.l.b16 %v259
        %v292 = vunpack.c.l.b16 %v260
        %v293 = vunpack.c.l.b16 %v261
        %v294 = vunpack.c.l.b16 %v262
        %v295 = vunpack.c.l.b16 %v263
        %v296 = vunpack.c.l.b16 %v264
        %v297 = vunpack.c.l.b16 %v265
        %v298 = vunpack.c.l.b16 %v266
        %v299 = vunpack.c.l.b16 %v267
        %v300 = vunpack.c.l.b16 %v268
        %v301 = vunpack.c.l.b16 %v269
        %v302 = vunpack.c.l.b16 %v270
        %v303 = vunpack.c.l.b16 %v271
        %v304 = vunpack.c.l.b16 %v272
        %v305 = vunpack.c.l.b16 %v273
        %v306 = vpack.c.b16 %v291, %v290
        %v307 = vpack.c.b16 %v293, %v292
        %v308 = vpack.c.b16 %v295, %v294
        %v309 = vpack.c.b16 %v297, %v296
        %v310 = vpack.c.b16 %v299, %v298
        %v311 = vpack.c.b16 %v301, %v300
        %v312 = vpack.c.b16 %v303, %v302
        %v313 = vpack.c.b16 %v305, %v304
        %322 = vmatprep.subr.bf16.mxu0 0
        %323 = vmatpush1.bf16.msra.mxu0 %v313
        %324 = vmatprep.subr.bf16.mxu0 0
        %325 = vmatpush1.bf16.msra.mxu0 %v312
        %326 = vmatprep.subr.bf16.mxu0 0
        %327 = vmatpush1.bf16.msra.mxu0 %v311
        %328 = vmatprep.subr.bf16.mxu0 0
        %329 = vmatpush1.bf16.msra.mxu0 %v310
        %330 = vmatprep.subr.bf16.mxu0 0
        %331 = vmatpush1.bf16.msra.mxu0 %v309
        %332 = vmatprep.subr.bf16.mxu0 0
        %333 = vmatpush1.bf16.msra.mxu0 %v308
        %334 = vmatprep.subr.bf16.mxu0 0
        %335 = vmatpush1.bf16.msra.mxu0 %v307
        %336 = vmatprep.subr.bf16.mxu0 0
        %337 = vmatpush1.bf16.msra.mxu0 %v306
        %338 = vmatprep.subr.bf16.mxu0 0
        %339 = vmatpush2.bf16.msra.mxu0 0
        %340 = vmatprep.subr.bf16.mxu0 0
        %341 = vmatpush2.bf16.msra.mxu0 0
        %342 = vmatprep.subr.bf16.mxu0 0
        %343 = vmatpush2.bf16.msra.mxu0 0
        %344 = vmatprep.subr.bf16.mxu0 0
        %345 = vmatpush2.bf16.msra.mxu0 0
        %346 = vmatprep.subr.bf16.mxu0 0
        %347 = vmatpush2.bf16.msra.mxu0 0
        %348 = vmatprep.subr.bf16.mxu0 0
        %349 = vmatpush2.bf16.msra.mxu0 0
        %350 = vmatprep.subr.bf16.mxu0 0
        %351 = vmatpush2.bf16.msra.mxu0 0
        %352 = vmatprep.subr.bf16.mxu0 0
        %353 = vmatpush2.bf16.msra.mxu0 0
        %354 = vmatprep.mubr.bf16.mxu0 0
        %355 = vmatmul.mubr.bf16.gmra.mxu0 %v257
        %v356 = vpop.f32.mrf.mxu0
        %v357 = vadd.f32 0.0, %v356
        %v358 = vpop.f32.mrf.mxu0
        %v359 = vpop.f32.mrf.mxu0
        %v360 = vpop.f32.mrf.mxu0
        %361 = vdwg.mxu0
        %v362 = vpack.c.bf16 %v357, %v357
        %v363 = vld [vmem:[%s2] sm:$0xf]
        %v364 = vld [vmem:[%s2 + $0x4] sm:$0xf]
        %v365 = vld [vmem:[%s2 + $0x8] sm:$0xf]
        %v366 = vld [vmem:[%s2 + $0xc] sm:$0xf]
        %v367 = vld [vmem:[%s3] sm:$0x1]
        %v369 = vlaneseq
        %v370 = vshrl.u32 %v369, 7
        %v371 = vsub.s32 0, %v370
        %v372 = vrot.slane %v367, %v371
        %v378 = vunpack.c.l.b16 %v363
        %v379 = vunpack.c.l.b16 %v364
        %v380 = vunpack.c.l.b16 %v365
        %v381 = vunpack.c.l.b16 %v366
        %v382 = vpack.c.b16 %v379, %v378
        %v383 = vpack.c.b16 %v381, %v380
        %vm386 = vcmask 261120
        %v388 = vsel %vm386, %v362, 0
        %390 = vmatprep.subr.bf16.mxu0 0
        %391 = vmatpush1.bf16.msra.mxu0 0
        %392 = vmatprep.subr.bf16.mxu0 0
        %393 = vmatpush1.bf16.msra.mxu0 0
        %394 = vmatprep.subr.bf16.mxu0 0
        %395 = vmatpush1.bf16.msra.mxu0 0
        %396 = vmatprep.subr.bf16.mxu0 0
        %397 = vmatpush1.bf16.msra.mxu0 0
        %398 = vmatprep.subr.bf16.mxu0 0
        %399 = vmatpush1.bf16.msra.mxu0 0
        %400 = vmatprep.subr.bf16.mxu0 0
        %401 = vmatpush1.bf16.msra.mxu0 0
        %402 = vmatprep.subr.bf16.mxu0 0
        %403 = vmatpush1.bf16.msra.mxu0 %v383
        %404 = vmatprep.subr.bf16.mxu0 0
        %405 = vmatpush1.bf16.msra.mxu0 %v382
        %406 = vmatprep.subr.bf16.mxu0 0
        %407 = vmatpush2.bf16.msra.mxu0 0
        %408 = vmatprep.subr.bf16.mxu0 0
        %409 = vmatpush2.bf16.msra.mxu0 0
        %410 = vmatprep.subr.bf16.mxu0 0
        %411 = vmatpush2.bf16.msra.mxu0 0
        %412 = vmatprep.subr.bf16.mxu0 0
        %413 = vmatpush2.bf16.msra.mxu0 0
        %414 = vmatprep.subr.bf16.mxu0 0
        %415 = vmatpush2.bf16.msra.mxu0 0
        %416 = vmatprep.subr.bf16.mxu0 0
        %417 = vmatpush2.bf16.msra.mxu0 0
        %418 = vmatprep.subr.bf16.mxu0 0
        %419 = vmatpush2.bf16.msra.mxu0 0
        %420 = vmatprep.subr.bf16.mxu0 0
        %421 = vmatpush2.bf16.msra.mxu0 0
        %422 = vmatprep.mubr.bf16.mxu0 0
        %423 = vmatmul.mubr.bf16.gmra.mxu0 %v388
        %v424 = vpop.f32.mrf.mxu0
        %v425 = vadd.f32 %v372, %v424
        %v426 = vpop.f32.mrf.mxu0
        %v427 = vpop.f32.mrf.mxu0
        %v428 = vpop.f32.mrf.mxu0
        %429 = vdwg.mxu0
        %v430 = vmul.f32 %v425, %v425
        %v431 = vmul.f32 %v425, %v430
        %v432 = vmul.f32 %v431, 0.044715
        %v433 = vadd.f32 %v425, %v432
        %v434 = vmul.f32 %v433, 0.7978846
        %v435 = vtanh.pop %v434
        %v436 = vadd.f32 %v435, 1.0
        %v437 = vmul.f32 %v436, 0.5
        %v438 = vmul.f32 %v425, %v437
        %v439 = vpack.c.bf16 %v438, %v438
        %v440 = vld [vmem:[%s4] sm:$0xf]
        %v441 = vld [vmem:[%s4 + $0x4] sm:$0xf]
        %v442 = vld [vmem:[%s4 + $0x8] sm:$0xf]
        %v443 = vld [vmem:[%s4 + $0xc] sm:$0xf]
        %v444 = vld [vmem:[%s4 + $0x10] sm:$0xf]
        %v445 = vld [vmem:[%s4 + $0x14] sm:$0xf]
        %v446 = vld [vmem:[%s4 + $0x18] sm:$0xf]
        %v447 = vld [vmem:[%s4 + $0x1c] sm:$0xf]
        %v448 = vld [vmem:[%s5] sm:$0x1]
        %v450 = vlaneseq
        %v451 = vshrl.u32 %v450, 7
        %v452 = vsub.s32 0, %v451
        %v453 = vrot.slane %v448, %v452
        %v463 = vunpack.c.l.b16 %v440
        %v464 = vunpack.c.l.b16 %v441
        %v465 = vunpack.c.l.b16 %v442
        %v466 = vunpack.c.l.b16 %v443
        %v467 = vunpack.c.l.b16 %v444
        %v468 = vunpack.c.l.b16 %v445
        %v469 = vunpack.c.l.b16 %v446
        %v470 = vunpack.c.l.b16 %v447
        %v471 = vpack.c.b16 %v464, %v463
        %v472 = vpack.c.b16 %v466, %v465
        %v473 = vpack.c.b16 %v468, %v467
        %v474 = vpack.c.b16 %v470, %v469
        %vm479 = vcmask 523264
        %v481 = vsel %vm479, %v439, 0
        %483 = vmatprep.subr.bf16.mxu0 0
        %484 = vmatpush1.bf16.msra.mxu0 0
        %485 = vmatprep.subr.bf16.mxu0 0
        %486 = vmatpush1.bf16.msra.mxu0 0
        %487 = vmatprep.subr.bf16.mxu0 0
        %488 = vmatpush1.bf16.msra.mxu0 0
        %489 = vmatprep.subr.bf16.mxu0 0
        %490 = vmatpush1.bf16.msra.mxu0 0
        %491 = vmatprep.subr.bf16.mxu0 0
        %492 = vmatpush1.bf16.msra.mxu0 %v474
        %493 = vmatprep.subr.bf16.mxu0 0
        %494 = vmatpush1.bf16.msra.mxu0 %v473
        %495 = vmatprep.subr.bf16.mxu0 0
        %496 = vmatpush1.bf16.msra.mxu0 %v472
        %497 = vmatprep.subr.bf16.mxu0 0
        %498 = vmatpush1.bf16.msra.mxu0 %v471
        %499 = vmatprep.subr.bf16.mxu0 0
        %500 = vmatpush2.bf16.msra.mxu0 0
        %501 = vmatprep.subr.bf16.mxu0 0
        %502 = vmatpush2.bf16.msra.mxu0 0
        %503 = vmatprep.subr.bf16.mxu0 0
        %504 = vmatpush2.bf16.msra.mxu0 0
        %505 = vmatprep.subr.bf16.mxu0 0
        %506 = vmatpush2.bf16.msra.mxu0 0
        %507 = vmatprep.subr.bf16.mxu0 0
        %508 = vmatpush2.bf16.msra.mxu0 0
        %509 = vmatprep.subr.bf16.mxu0 0
        %510 = vmatpush2.bf16.msra.mxu0 0
        %511 = vmatprep.subr.bf16.mxu0 0
        %512 = vmatpush2.bf16.msra.mxu0 0
        %513 = vmatprep.subr.bf16.mxu0 0
        %514 = vmatpush2.bf16.msra.mxu0 0
        %515 = vmatprep.mubr.bf16.mxu0 0
        %516 = vmatmul.mubr.bf16.gmra.mxu0 %v481
        %v517 = vpop.f32.mrf.mxu0
        %v518 = vadd.f32 %v453, %v517
        %v519 = vpop.f32.mrf.mxu0
        %v520 = vpop.f32.mrf.mxu0
        %v521 = vpop.f32.mrf.mxu0
        %522 = vdwg.mxu0
        %523 = vst [vmem:[%s242] sm:$0xff] %v518
        %s524 = sand.u32 %s159, 1
        %s525 = scalar_lea.sflag [#allocation3], %s524
        %s526 = sand.u32 %s159, 1
        %s527 = smul.addr %s526, 8
        %s528 = scalar_lea.vmem [#allocation2], %s527
        // Predicated region
        $region45: #{tpu_custom_call.1} parent=43 // pred_check
          %p529 = pneg %p169
        $region46: #{tpu_custom_call.1} parent=43 // pred_check_branch
          %531 = sbr.rel (%p529) target = $region48
        $region47: #{tpu_custom_call.1} parent=43 // pred_region
          %s533 = ssub.s32 128, 128
          %534 = vsyncadd %s525, %s533
          %s535 = smul.addr %s20, 128
          %s536 = scalar_lea.hbm %s6, %s535
          %s538 = sshll.u32 %s528, 4
          %s539 = int_to_ptr.vmem [resolvable:$true] %s538
          %541 = dma.vmem_to_hbm [thread:$0]  %s539, 128, %s536, %s525
        $region48: #{tpu_custom_call.1} parent=43 // pred_fallthru
          _
      $region44: #{tpu_custom_call.1} parent=5 // pred_fallthru
        _
      %p542 = scmp.le.s32.totalorder 2, %s15
      // Predicated region
      $region49: #{tpu_custom_call.1} parent=5 // pred_check
        %p543 = pneg %p542
      $region50: #{tpu_custom_call.1} parent=5 // pred_check_branch
        %545 = sbr.rel (%p543) target = $region52
      $region51: #{tpu_custom_call.1} parent=5 // pred_region
        %s546 = ssub.s32 %s15, 2
        // Predicated region
        $region53: #{tpu_custom_call.1} parent=51 // pred_check
          %p547 = pneg %p175
        $region54: #{tpu_custom_call.1} parent=51 // pred_check_branch
          %549 = sbr.rel (%p547) target = $region56
        $region55: #{tpu_custom_call.1} parent=51 // pred_region
          %s550 = sand.u32 %s160, 1
          %s551 = scalar_lea.sflag [#allocation3], %s550
          %s552 = sand.u32 %s160, 1
          %s553 = smul.addr %s552, 8
          %s554 = scalar_lea.vmem [#allocation2], %s553
          %555 = dma.done %s551, 128
        $region56: #{tpu_custom_call.1} parent=51 // pred_fallthru
          _
      $region52: #{tpu_custom_call.1} parent=5 // pred_fallthru
        _
    $region6: #{tpu_custom_call.1} parent=1 // loop_footer
      %s19 = sadd.s32 1, %s15
    $region7: #{tpu_custom_call.1} parent=1 // loop_footer_branch
      %14 = sbr.rel target = $region3
    $region8: #{tpu_custom_call.1} parent=1 // loop_exit
      _
    %556 = vsyncpa [#allocation3], 1
    %s557 = scalar_lea.sflag [#allocation3], 1
    %558 = vsyncpa %s557, 1

</llo_original>
